<compile_context>
chip_gen: v7x
topology: tpu7x:2x2x1
jax: 0.10.0
libtpu: 0.0.40
codegen_flags: <defaults>
</compile_context>

<pallas_src>
from functools import partial

import numpy as np
import jax
import jax.numpy as jnp
from jax.experimental import pallas as pl
from jax.experimental.pallas import tpu as pltpu

ATOMIC_NUMBERS = (1, 6, 7, 8, 9)  # H, C, N, O, F  -> element indices 0..4


# --------------------------------------------------------------------------- #
# Kernel
# --------------------------------------------------------------------------- #
def _make_kernel(n3):
    def kernel(tile_elem_ref,            # scalar prefetch (SMEM): per-tile element idx
               x_ref,                    # (Gs, TILE_M) bf16, atoms along lanes
               w1_ref, b1_ref,           # (5, n0, Gs) bf16, (5, n0, 1) f32  (resident)
               w2_ref, b2_ref,           # (5, n1, n0) bf16, (5, n1, 1) f32  (resident)
               w3_ref, b3_ref,           # (5, n2, n1) bf16, (5, n2, 1) f32  (resident)
               w4_ref, b4_ref,           # (5, n2, n3) f32,  (5, n3, 1) f32  (resident)
               o_ref):                   # (n3, TILE_M) f32 (lane-dense)
        e = tile_elem_ref[pl.program_id(0)]          # element of this (homogeneous) tile
        x = x_ref[...]                                                    # bf16
        h = jnp.dot(w1_ref[e], x, preferred_element_type=jnp.float32) + b1_ref[e]
        h = jnp.maximum(h, 0.0).astype(jnp.bfloat16)
        h = jnp.dot(w2_ref[e], h, preferred_element_type=jnp.float32) + b2_ref[e]
        h = jnp.maximum(h, 0.0).astype(jnp.bfloat16)
        h = jnp.dot(w3_ref[e], h, preferred_element_type=jnp.float32) + b3_ref[e]
        h = jnp.maximum(h, 0.0)                                           # (n2, TM) f32
        if n3 == 1:
            # final layer on VPU (mul) + XLU (sublane reduce); output already lane-dense
            out = jnp.sum(h * w4_ref[e], axis=0, keepdims=True) + b4_ref[e]
        else:
            out = jax.lax.dot_general(
                w4_ref[e], h, dimension_numbers=(((0,), (0,)), ((), ())),
                preferred_element_type=jnp.float32) + b4_ref[e]
        o_ref[...] = out.astype(o_ref.dtype)
    return kernel


# --------------------------------------------------------------------------- #
# Parameters
# --------------------------------------------------------------------------- #
def init_params(key, Gs_num, nodes):
    """5 stacked element nets. Hidden weights bf16 (MXU), last-layer + biases f32."""
    dims = [Gs_num] + list(nodes)
    n_layers = len(dims) - 1
    params = []
    for li in range(n_layers):
        fan_in, fan_out = dims[li], dims[li + 1]
        key, kw, kb = jax.random.split(key, 3)
        bound = 1.0 / float(np.sqrt(fan_in))
        W = jax.random.uniform(kw, (5, fan_out, fan_in), jnp.float32, -bound, bound)
        b = jax.random.uniform(kb, (5, fan_out), jnp.float32, -bound, bound)
        if li == n_layers - 1:
            W = jnp.transpose(W, (0, 2, 1))          # (5, fan_in, fan_out), f32, VPU path
        else:
            W = W.astype(jnp.bfloat16)               # bf16 MXU operands
        params.append((W, b.reshape(5, fan_out, 1)))
    return params


# --------------------------------------------------------------------------- #
# Host-side (once per atom composition): group atoms by element, pad to tile_m
# --------------------------------------------------------------------------- #
def prepare_grouping(z_col, tile_m):
    """z_col: (N,) float/int atomic numbers. Returns (perm int32 (N_pad,),
    tile_elem int32 (T,)) with homogeneous, tile_m-aligned element groups."""
    z = np.asarray(z_col, dtype=np.float64)
    if z.size == 0:
        raise ValueError("empty batch: need at least one atom")
    zi = np.rint(z).astype(np.int64)
    if not np.all(z == zi):                             # exact-match validation
        raise ValueError("atomic numbers must be exact integers")
    lut = {zz: i for i, zz in enumerate(ATOMIC_NUMBERS)}
    bad = sorted({int(v) for v in zi if int(v) not in lut})
    if bad:
        raise ValueError(f"unsupported atomic numbers {bad}; expected one of {ATOMIC_NUMBERS}")
    elem_idx = np.array([lut[int(v)] for v in zi], dtype=np.int32)

    perm_chunks, tile_elems = [], []
    for e in range(len(ATOMIC_NUMBERS)):
        idx = np.nonzero(elem_idx == e)[0].astype(np.int32)
        if idx.size == 0:
            continue
        n_tiles = -(-idx.size // tile_m)
        pad = n_tiles * tile_m - idx.size
        if pad:
            # padding rows duplicate a real atom of the group -> identical outputs,
            # so the inverse scatter with duplicate indices is safe
            idx = np.concatenate([idx, np.full((pad,), idx[0], dtype=np.int32)])
        perm_chunks.append(idx)
        tile_elems.extend([e] * n_tiles)
    perm = np.concatenate(perm_chunks)
    tile_elem = np.asarray(tile_elems, dtype=np.int32)
    return jnp.asarray(perm), jnp.asarray(tile_elem)


# --------------------------------------------------------------------------- #
# Device-side (jitted, hot path): gather -> kernel -> inverse scatter
# --------------------------------------------------------------------------- #
@partial(jax.jit, static_argnames=("Gs_num", "nodes", "tile_m"))
def _apply_grouped(params, feats, perm, tile_elem, *, Gs_num, nodes, tile_m):
    n0, n1, n2, n3 = nodes
    N = feats.shape[0]
    n_pad = perm.shape[0]
    n_tiles = tile_elem.shape[0]

    # transposed feature layout: (Gs, N_pad), atoms along the lane axis, bf16 operands
    feats_t = jnp.take(feats, perm, axis=0).T.astype(jnp.bfloat16)

    (W1, b1), (W2, b2), (W3, b3), (W4, b4) = params

    def const3(t, te):
        return (0, 0, 0)

    grid_spec = pltpu.PrefetchScalarGridSpec(
        num_scalar_prefetch=1,
        grid=(n_tiles,),
        in_specs=[
            pl.BlockSpec((Gs_num, tile_m), lambda t, te: (0, t)),
            # whole stacked element nets, VMEM-resident (constant block index)
            pl.BlockSpec(W1.shape, const3),
            pl.BlockSpec(b1.shape, const3),
            pl.BlockSpec(W2.shape, const3),
            pl.BlockSpec(b2.shape, const3),
            pl.BlockSpec(W3.shape, const3),
            pl.BlockSpec(b3.shape, const3),
            pl.BlockSpec(W4.shape, const3),
            pl.BlockSpec(b4.shape, const3),
        ],
        out_specs=pl.BlockSpec((n3, tile_m), lambda t, te: (0, t)),
    )

    flops = 2 * (Gs_num * n0 + n0 * n1 + n1 * n2 + n2 * n3) * n_pad
    w_bytes = sum(int(np.prod(W.shape)) * W.dtype.itemsize
                  + int(np.prod(b.shape)) * b.dtype.itemsize
                  for W, b in params)
    bytes_accessed = n_pad * Gs_num * 2 + n_pad * n3 * 4 + w_bytes

    out = pl.pallas_call(
        _make_kernel(n3),
        out_shape=jax.ShapeDtypeStruct((n3, n_pad), jnp.float32),
        grid_spec=grid_spec,
        compiler_params=pltpu.CompilerParams(
            dimension_semantics=("parallel",)),   # independent atom tiles -> both TCs on v7x
        cost_estimate=pl.CostEstimate(flops=flops, transcendentals=0,
                                      bytes_accessed=bytes_accessed),
    )(tile_elem, feats_t, W1, b1, W2, b2, W3, b3, W4, b4)

    # undo grouping; padded duplicates write identical values so scatter is safe
    return jnp.zeros((N, n3), jnp.float32).at[perm].set(out.T)


# --------------------------------------------------------------------------- #
# Public wrappers
# --------------------------------------------------------------------------- #
def atomic_net_forward_batch(x_batch, params, Gs_num, nodes, tile_m=512):
    """x_batch: (N, Gs_num+1); column 0 = atomic number in {1,6,7,8,9}.
    Returns (N, nodes[-1]). tile_m: atoms per grid step (multiple of 128;
    prefer multiples of 256 on v6e/v7x, sized so padding waste stays small)."""
    assert len(nodes) == 4, "atomicNet has 4 linear layers"
    assert tile_m % 128 == 0, "atom tile must be a multiple of 128 lanes"
    xb = np.asarray(x_batch, dtype=np.float32)
    if xb.ndim != 2 or xb.shape[1] != Gs_num + 1:
        raise ValueError(f"expected (N, {Gs_num + 1}) input, got {xb.shape}")
    if xb.shape[0] == 0:
        raise ValueError("empty batch")
    # Host-side permutation (do this ONCE per fixed atom composition and reuse;
    # the per-call hot path below is fully on-device and jitted).
    perm, tile_elem = prepare_grouping(xb[:, 0], tile_m)
    feats = jnp.asarray(xb[:, 1:])
    return _apply_grouped(params, feats, perm, tile_elem,
                          Gs_num=Gs_num, nodes=tuple(nodes), tile_m=tile_m)


def atomic_net_forward(x, params, Gs_num, nodes):
    """PyTorch-equivalent forward: x[0] = atomic number, x[1:] = features -> (nodes[-1],)."""
    x = jnp.asarray(x, dtype=jnp.float32).reshape(1, Gs_num + 1)
    out = atomic_net_forward_batch(x, params, Gs_num, nodes, tile_m=128)
    return out.reshape((nodes[-1],))


# --------------------------------------------------------------------------- #
# Pure-JAX reference (mirrors kernel numerics: bf16 MXU ops, f32 accumulation)
# --------------------------------------------------------------------------- #
def _reference_forward_batch(feats, elem_idx, params):
    (W1, b1), (W2, b2), (W3, b3), (W4, b4) = params
    outs = []
    for e in range(len(ATOMIC_NUMBERS)):
        h = feats.astype(jnp.bfloat16)                                        # (N, Gs)
        h = jnp.dot(h, W1[e].T, preferred_element_type=jnp.float32) + b1[e][:, 0]
        h = jnp.maximum(h, 0.0).astype(jnp.bfloat16)
        h = jnp.dot(h, W2[e].T, preferred_element_type=jnp.float32) + b2[e][:, 0]
        h = jnp.maximum(h, 0.0).astype(jnp.bfloat16)
        h = jnp.dot(h, W3[e].T, preferred_element_type=jnp.float32) + b3[e][:, 0]
        h = jnp.maximum(h, 0.0)                                               # (N, n2) f32
        o = jnp.sum(h[:, :, None] * W4[e][None, :, :], axis=1) + b4[e][:, 0]  # (N, n3) f32
        outs.append(o)
    outs = jnp.stack(outs, axis=0)                                            # (5, N, n3)
    return outs[jnp.asarray(elem_idx), jnp.arange(feats.shape[0])]


# --------------------------------------------------------------------------- #
# Demo / self-test
# --------------------------------------------------------------------------- #
if __name__ == "__main__":
    Gs_num = 32
    nodes = [64, 64, 32, 1]
    # N=1024 over 5 elements -> ~205 atoms/element: tile_m=256 fills the 256-wide
    # v6e/v7x MXU, keeps padding small and gives 5 parallel tiles for the 2 v7x TCs.
    # For larger batches use the default tile_m=512 (or 1024).
    tile_m = 256

    key = jax.random.PRNGKey(0)
    kp, kz, kx = jax.random.split(key, 3)
    params = init_params(kp, Gs_num, nodes)

    # batch of atoms with mixed elements
    N = 1024
    z_choices = jnp.asarray(ATOMIC_NUMBERS, dtype=jnp.float32)
    z = z_choices[jax.random.randint(kz, (N, 1), 0, len(ATOMIC_NUMBERS))]
    feats = jax.random.normal(kx, (N, Gs_num), dtype=jnp.float32)
    x_batch = jnp.concatenate([z, feats], axis=1)                    # (N, Gs_num + 1)

    out = atomic_net_forward_batch(x_batch, params, Gs_num, nodes, tile_m=tile_m)
    out = jax.block_until_ready(out)
    # second call hits the jit cache (hot path is device-only)
    out = jax.block_until_ready(
        atomic_net_forward_batch(x_batch, params, Gs_num, nodes, tile_m=tile_m))

    elem_idx = np.array([ATOMIC_NUMBERS.index(int(v)) for v in np.asarray(z[:, 0])],
                        dtype=np.int32)
    ref = _reference_forward_batch(feats, elem_idx, params)
    assert jnp.allclose(out, ref, atol=1e-3, rtol=1e-3), float(jnp.max(jnp.abs(out - ref)))

    # single-atom path (exact PyTorch forward semantics: x[0]=Z, x[1:]=features)
    out_single = jax.block_until_ready(atomic_net_forward(x_batch[3], params, Gs_num, nodes))
    assert jnp.allclose(out_single, ref[3], atol=1e-3, rtol=1e-3)

    print("KERNEL_OK")
</pallas_src>

<mosaic_0001>
module attributes {stable_mosaic.version = 11 : i64} {
  func.func @kernel(%arg0: i32, %arg1: memref<5xi32, #tpu.memory_space<smem>>, %arg2: memref<32x256xbf16, #tpu.memory_space<vmem>>, %arg3: memref<5x64x32xbf16, #tpu.memory_space<vmem>>, %arg4: memref<5x64x1xf32, #tpu.memory_space<vmem>>, %arg5: memref<5x64x64xbf16, #tpu.memory_space<vmem>>, %arg6: memref<5x64x1xf32, #tpu.memory_space<vmem>>, %arg7: memref<5x32x64xbf16, #tpu.memory_space<vmem>>, %arg8: memref<5x32x1xf32, #tpu.memory_space<vmem>>, %arg9: memref<5x32x1xf32, #tpu.memory_space<vmem>>, %arg10: memref<5x1x1xf32, #tpu.memory_space<vmem>>, %arg11: memref<1x256xf32, #tpu.memory_space<vmem>>) attributes {dimension_semantics = [#tpu.dimension_semantics<parallel>], iteration_bounds = array<i64: 5>, scalar_prefetch = 1 : i64, scratch_operands = 0 : i64, tpu.core_type = #tpu.core_type<tc>, window_params = [{transform_indices = @transform_0, window_bounds = array<i64: 32, 256>}, {pipeline_mode = #tpu.pipeline_mode<synchronous>, transform_indices = @transform_1, window_bounds = array<i64: 5, 64, 32>}, {pipeline_mode = #tpu.pipeline_mode<synchronous>, transform_indices = @transform_2, window_bounds = array<i64: 5, 64, 1>}, {pipeline_mode = #tpu.pipeline_mode<synchronous>, transform_indices = @transform_3, window_bounds = array<i64: 5, 64, 64>}, {pipeline_mode = #tpu.pipeline_mode<synchronous>, transform_indices = @transform_4, window_bounds = array<i64: 5, 64, 1>}, {pipeline_mode = #tpu.pipeline_mode<synchronous>, transform_indices = @transform_5, window_bounds = array<i64: 5, 32, 64>}, {pipeline_mode = #tpu.pipeline_mode<synchronous>, transform_indices = @transform_6, window_bounds = array<i64: 5, 32, 1>}, {pipeline_mode = #tpu.pipeline_mode<synchronous>, transform_indices = @transform_7, window_bounds = array<i64: 5, 32, 1>}, {pipeline_mode = #tpu.pipeline_mode<synchronous>, transform_indices = @transform_8, window_bounds = array<i64: 5, 1, 1>}, {transform_indices = @transform_9, window_bounds = array<i64: 1, 256>}]} {
    %0 = arith.index_cast %arg0 : i32 to index
    %1 = memref.load %arg1[%0] : memref<5xi32, #tpu.memory_space<smem>>
    %c0 = arith.constant 0 : index
    %c0_0 = arith.constant 0 : index
    %2 = vector.load %arg2[%c0, %c0_0] : memref<32x256xbf16, #tpu.memory_space<vmem>>, vector<32x256xbf16>
    %3 = arith.index_cast %1 : i32 to index
    %c0_1 = arith.constant 0 : index
    %c0_2 = arith.constant 0 : index
    %4 = vector.load %arg3[%3, %c0_1, %c0_2] : memref<5x64x32xbf16, #tpu.memory_space<vmem>>, vector<1x64x32xbf16>
    %5 = vector.shape_cast %4 : vector<1x64x32xbf16> to vector<64x32xbf16>
    %cst = arith.constant dense<0.000000e+00> : vector<64x256xf32>
    %6 = tpu.matmul %5, %2, %cst {dimension_numbers = #tpu.dot_dimension_numbers<[1], [0], [0], [1], [0, 0, 1, 1], [], []>} : vector<64x32xbf16>, vector<32x256xbf16>, vector<64x256xf32> -> vector<64x256xf32>
    %7 = arith.index_cast %1 : i32 to index
    %c0_3 = arith.constant 0 : index
    %c0_4 = arith.constant 0 : index
    %8 = vector.load %arg4[%7, %c0_3, %c0_4] : memref<5x64x1xf32, #tpu.memory_space<vmem>>, vector<1x64x1xf32>
    %9 = vector.shape_cast %8 : vector<1x64x1xf32> to vector<64x1xf32>
    %10 = vector.broadcast %9 : vector<64x1xf32> to vector<64x256xf32>
    %11 = arith.addf %6, %10 : vector<64x256xf32>
    %cst_5 = arith.constant 0.000000e+00 : f32
    %12 = vector.broadcast %cst_5 : f32 to vector<64x256xf32>
    %13 = arith.maximumf %11, %12 : vector<64x256xf32>
    %14 = arith.truncf %13 : vector<64x256xf32> to vector<64x256xbf16>
    %15 = arith.index_cast %1 : i32 to index
    %c0_6 = arith.constant 0 : index
    %c0_7 = arith.constant 0 : index
    %16 = vector.load %arg5[%15, %c0_6, %c0_7] : memref<5x64x64xbf16, #tpu.memory_space<vmem>>, vector<1x64x64xbf16>
    %17 = vector.shape_cast %16 : vector<1x64x64xbf16> to vector<64x64xbf16>
    %cst_8 = arith.constant dense<0.000000e+00> : vector<64x256xf32>
    %18 = tpu.matmul %17, %14, %cst_8 {dimension_numbers = #tpu.dot_dimension_numbers<[1], [0], [0], [1], [0, 0, 1, 1], [], []>} : vector<64x64xbf16>, vector<64x256xbf16>, vector<64x256xf32> -> vector<64x256xf32>
    %19 = arith.index_cast %1 : i32 to index
    %c0_9 = arith.constant 0 : index
    %c0_10 = arith.constant 0 : index
    %20 = vector.load %arg6[%19, %c0_9, %c0_10] : memref<5x64x1xf32, #tpu.memory_space<vmem>>, vector<1x64x1xf32>
    %21 = vector.shape_cast %20 : vector<1x64x1xf32> to vector<64x1xf32>
    %22 = vector.broadcast %21 : vector<64x1xf32> to vector<64x256xf32>
    %23 = arith.addf %18, %22 : vector<64x256xf32>
    %cst_11 = arith.constant 0.000000e+00 : f32
    %24 = vector.broadcast %cst_11 : f32 to vector<64x256xf32>
    %25 = arith.maximumf %23, %24 : vector<64x256xf32>
    %26 = arith.truncf %25 : vector<64x256xf32> to vector<64x256xbf16>
    %27 = arith.index_cast %1 : i32 to index
    %c0_12 = arith.constant 0 : index
    %c0_13 = arith.constant 0 : index
    %28 = vector.load %arg7[%27, %c0_12, %c0_13] : memref<5x32x64xbf16, #tpu.memory_space<vmem>>, vector<1x32x64xbf16>
    %29 = vector.shape_cast %28 : vector<1x32x64xbf16> to vector<32x64xbf16>
    %cst_14 = arith.constant dense<0.000000e+00> : vector<32x256xf32>
    %30 = tpu.matmul %29, %26, %cst_14 {dimension_numbers = #tpu.dot_dimension_numbers<[1], [0], [0], [1], [0, 0, 1, 1], [], []>} : vector<32x64xbf16>, vector<64x256xbf16>, vector<32x256xf32> -> vector<32x256xf32>
    %31 = arith.index_cast %1 : i32 to index
    %c0_15 = arith.constant 0 : index
    %c0_16 = arith.constant 0 : index
    %32 = vector.load %arg8[%31, %c0_15, %c0_16] : memref<5x32x1xf32, #tpu.memory_space<vmem>>, vector<1x32x1xf32>
    %33 = vector.shape_cast %32 : vector<1x32x1xf32> to vector<32x1xf32>
    %34 = vector.broadcast %33 : vector<32x1xf32> to vector<32x256xf32>
    %35 = arith.addf %30, %34 : vector<32x256xf32>
    %cst_17 = arith.constant 0.000000e+00 : f32
    %36 = vector.broadcast %cst_17 : f32 to vector<32x256xf32>
    %37 = arith.maximumf %35, %36 : vector<32x256xf32>
    %38 = arith.index_cast %1 : i32 to index
    %c0_18 = arith.constant 0 : index
    %c0_19 = arith.constant 0 : index
    %39 = vector.load %arg9[%38, %c0_18, %c0_19] : memref<5x32x1xf32, #tpu.memory_space<vmem>>, vector<1x32x1xf32>
    %40 = vector.shape_cast %39 : vector<1x32x1xf32> to vector<32x1xf32>
    %41 = vector.broadcast %40 : vector<32x1xf32> to vector<32x256xf32>
    %42 = arith.mulf %37, %41 : vector<32x256xf32>
    %cst_20 = arith.constant dense<0.000000e+00> : vector<256xf32>
    %43 = vector.multi_reduction <add>, %42, %cst_20 [0] : vector<32x256xf32> to vector<256xf32>
    %44 = vector.shape_cast %43 : vector<256xf32> to vector<1x256xf32>
    %45 = arith.index_cast %1 : i32 to index
    %c0_21 = arith.constant 0 : index
    %c0_22 = arith.constant 0 : index
    %46 = vector.load %arg10[%45, %c0_21, %c0_22] : memref<5x1x1xf32, #tpu.memory_space<vmem>>, vector<1x1x1xf32>
    %47 = vector.shape_cast %46 : vector<1x1x1xf32> to vector<1x1xf32>
    %48 = vector.broadcast %47 : vector<1x1xf32> to vector<1x256xf32>
    %49 = arith.addf %44, %48 : vector<1x256xf32>
    %c0_23 = arith.constant 0 : index
    %c0_24 = arith.constant 0 : index
    %50 = vector.load %arg11[%c0_23, %c0_24] : memref<1x256xf32, #tpu.memory_space<vmem>>, vector<1x256xf32>
    tpu.vector_store %arg11[%c0_23, %c0_24], %49 {strides = array<i32>} : memref<1x256xf32, #tpu.memory_space<vmem>>, vector<1x256xf32>,
    return
  }
  func.func @transform_0(%arg0: i32, %arg1: memref<5xi32, #tpu.memory_space<smem>>) -> (i32, i32) {
    %c0_i32 = arith.constant 0 : i32
    %c0_i32_0 = arith.constant 0 : i32
    return %c0_i32, %arg0 : i32, i32
  }
  func.func @transform_1(%arg0: i32, %arg1: memref<5xi32, #tpu.memory_space<smem>>) -> (i32, i32, i32) {
    %c0_i32 = arith.constant 0 : i32
    %c0_i32_0 = arith.constant 0 : i32
    %c0_i32_1 = arith.constant 0 : i32
    %c0_i32_2 = arith.constant 0 : i32
    return %c0_i32, %c0_i32_0, %c0_i32_1 : i32, i32, i32
  }
  func.func @transform_2(%arg0: i32, %arg1: memref<5xi32, #tpu.memory_space<smem>>) -> (i32, i32, i32) {
    %c0_i32 = arith.constant 0 : i32
    %c0_i32_0 = arith.constant 0 : i32
    %c0_i32_1 = arith.constant 0 : i32
    %c0_i32_2 = arith.constant 0 : i32
    return %c0_i32, %c0_i32_0, %c0_i32_1 : i32, i32, i32
  }
  func.func @transform_3(%arg0: i32, %arg1: memref<5xi32, #tpu.memory_space<smem>>) -> (i32, i32, i32) {
    %c0_i32 = arith.constant 0 : i32
    %c0_i32_0 = arith.constant 0 : i32
    %c0_i32_1 = arith.constant 0 : i32
    %c0_i32_2 = arith.constant 0 : i32
    return %c0_i32, %c0_i32_0, %c0_i32_1 : i32, i32, i32
  }
  func.func @transform_4(%arg0: i32, %arg1: memref<5xi32, #tpu.memory_space<smem>>) -> (i32, i32, i32) {
    %c0_i32 = arith.constant 0 : i32
    %c0_i32_0 = arith.constant 0 : i32
    %c0_i32_1 = arith.constant 0 : i32
    %c0_i32_2 = arith.constant 0 : i32
    return %c0_i32, %c0_i32_0, %c0_i32_1 : i32, i32, i32
  }
  func.func @transform_5(%arg0: i32, %arg1: memref<5xi32, #tpu.memory_space<smem>>) -> (i32, i32, i32) {
    %c0_i32 = arith.constant 0 : i32
    %c0_i32_0 = arith.constant 0 : i32
    %c0_i32_1 = arith.constant 0 : i32
    %c0_i32_2 = arith.constant 0 : i32
    return %c0_i32, %c0_i32_0, %c0_i32_1 : i32, i32, i32
  }
  func.func @transform_6(%arg0: i32, %arg1: memref<5xi32, #tpu.memory_space<smem>>) -> (i32, i32, i32) {
    %c0_i32 = arith.constant 0 : i32
    %c0_i32_0 = arith.constant 0 : i32
    %c0_i32_1 = arith.constant 0 : i32
    %c0_i32_2 = arith.constant 0 : i32
    return %c0_i32, %c0_i32_0, %c0_i32_1 : i32, i32, i32
  }
  func.func @transform_7(%arg0: i32, %arg1: memref<5xi32, #tpu.memory_space<smem>>) -> (i32, i32, i32) {
    %c0_i32 = arith.constant 0 : i32
    %c0_i32_0 = arith.constant 0 : i32
    %c0_i32_1 = arith.constant 0 : i32
    %c0_i32_2 = arith.constant 0 : i32
    return %c0_i32, %c0_i32_0, %c0_i32_1 : i32, i32, i32
  }
  func.func @transform_8(%arg0: i32, %arg1: memref<5xi32, #tpu.memory_space<smem>>) -> (i32, i32, i32) {
    %c0_i32 = arith.constant 0 : i32
    %c0_i32_0 = arith.constant 0 : i32
    %c0_i32_1 = arith.constant 0 : i32
    %c0_i32_2 = arith.constant 0 : i32
    return %c0_i32, %c0_i32_0, %c0_i32_1 : i32, i32, i32
  }
  func.func @transform_9(%arg0: i32, %arg1: memref<5xi32, #tpu.memory_space<smem>>) -> (i32, i32) {
    %c0_i32 = arith.constant 0 : i32
    %c0_i32_0 = arith.constant 0 : i32
    return %c0_i32, %arg0 : i32, i32
  }
}

</mosaic_0001>

<llo_original>
// kernel: _apply_grouped.1
$region0: #{_apply_grouped.1}
  #allocation0 [shape = 'u32[]', space=smem, size = 0x4, offset = 0x4, fixed_abs, tag = 'smem constant byte address 0x4 - core index']
  #allocation1 [shape = 'u32[144,128]{1,0:T(1,128)}', space=vmem, size = 0x12000, scoped, tag = 'internal scratch']
  #allocation2 [shape = 's32[1]{0}', space=sflag, size = 0x4, scoped, tag = 'scoped memory for _apply_grouped.1']
  #allocation3 [shape = 'u8[512]{0}', space=smem, size = 0x200, scoped, tag = 'prefetched SMEM operand 0']
  %s0 = inlined_call_operand.vmem [shape: s32[5], index: 0, kind: input, shape index: {}]
  %s1 = inlined_call_operand.vmem [shape: bf16[32,1280], index: 1, kind: input, shape index: {}]
  %s2 = inlined_call_operand.vmem [shape: bf16[5,64,32], index: 2, kind: input, shape index: {}]
  %s3 = inlined_call_operand.vmem [shape: f32[5,64,1], index: 3, kind: input, shape index: {}]
  %s4 = inlined_call_operand.vmem [shape: bf16[5,64,64], index: 4, kind: input, shape index: {}]
  %s5 = inlined_call_operand.vmem [shape: f32[5,64,1], index: 5, kind: input, shape index: {}]
  %s6 = inlined_call_operand.vmem [shape: bf16[5,32,64], index: 6, kind: input, shape index: {}]
  %s7 = inlined_call_operand.vmem [shape: f32[5,32,1], index: 7, kind: input, shape index: {}]
  %s8 = inlined_call_operand.vmem [shape: f32[5,32,1], index: 8, kind: input, shape index: {}]
  %s9 = inlined_call_operand.vmem [shape: f32[5,1,1], index: 9, kind: input, shape index: {}]
  %s10 = inlined_call_operand.vmem [shape: f32[1,1280], index: 10, kind: output, shape index: {}]
  %s11 = sld [smem:[#allocation0]]
  $region107: #{_apply_grouped.1} parent=0
    _
  %s13 = ssub.s32 1, %s11
  %s14 = scalar_select 0, %s13, %s11
  %s15 = sshll.u32 %s0, 4
  %s16 = int_to_ptr.vmem [resolvable:$true] %s15
  %18 = dma.vmem_to_smem %s16, 16, [#allocation3], [#allocation2]
  %19 = dma.done [#allocation2], 16
  %20 = sfence
  $region1: #{_apply_grouped.1} parent=0
    #allocation4 [shape = 'u8[32768]{0}', space=vmem, size = 0x8000, scoped, tag = 'input window, operand 1']
    loop: start=0, step=1, limit=7
    $region2: #{_apply_grouped.1} parent=1 // loop_pre_header
      _
    $region3: #{_apply_grouped.1} parent=1 // loop_header
      %s22 = sphi 0, %s26
      %p23 = scmp.ge.s32.totalorder %s22, 7
      %s32 = sphi 0, %s34
      %s35 = sphi 0, %s32
      %s36 = sphi 0, %s35
      %s52 = sphi 0, %s36
      %s56 = sphi 0, %s56
      %s58 = sphi 0, %s56
      %s59 = sphi 0, %s58
      %s73 = sphi 0, %s59
      %s77 = sphi 0, %s77
      %s79 = sphi 0, %s77
      %s80 = sphi 0, %s79
      %s94 = sphi 0, %s80
      %s98 = sphi 0, %s98
      %s100 = sphi 0, %s98
      %s101 = sphi 0, %s100
      %s115 = sphi 0, %s101
      %s119 = sphi 0, %s119
      %s121 = sphi 0, %s119
      %s122 = sphi 0, %s121
      %s136 = sphi 0, %s122
      %s140 = sphi 0, %s140
      %s142 = sphi 0, %s140
      %s143 = sphi 0, %s142
      %s157 = sphi 0, %s143
      %s161 = sphi 0, %s161
      %s163 = sphi 0, %s161
      %s164 = sphi 0, %s163
      %s178 = sphi 0, %s164
      %s182 = sphi 0, %s182
      %s184 = sphi 0, %s182
      %s185 = sphi 0, %s184
      %s199 = sphi 0, %s185
      %s203 = sphi 0, %s203
      %s205 = sphi 0, %s203
      %s206 = sphi 0, %s205
      %s220 = sphi 0, %s206
      %s226 = sphi 0, %s228
      %s229 = sphi 0, %s226
      %s230 = sphi 0, %s229
      %s246 = sphi 0, %s230
    $region4: #{_apply_grouped.1} parent=1 // loop_header_branch
      %25 = sbr.rel (%p23) target = $region8
    $region5: #{_apply_grouped.1} parent=1 // loop_body
      %s27 = ssub.s32 %s22, 1
      %s28 = ssub.s32 %s22, 2
      %s29 = sadd.s32 %s22, 1
      %s30 = ssub.s32 %s22, %s29
      %p31 = scmp.eq.s32.totalorder %s30, 0
      %s33 = sadd.s32 %s32, 1
      %s34 = scalar_select %p31, %s32, %s33
      %p37 = pneg %p31
      %p38 = scmp.eq.s32.totalorder %s22, 4
      %p39 = por %p37, %p38
      %p40 = scmp.ne.s32.totalorder %s32, %s35
      %p41 = scmp.eq.s32.totalorder %s22, 0
      %p42 = por %p40, %p41
      %p43 = scmp.ne.s32.totalorder %s32, %s35
      %p44 = scmp.eq.s32.totalorder %s27, 4
      %p45 = por %p43, %p44
      %p46 = scmp.ne.s32.totalorder %s35, %s36
      %p47 = scmp.eq.s32.totalorder %s27, 0
      %p48 = por %p46, %p47
      %p49 = scmp.ne.s32.totalorder %s35, %s36
      %p50 = scmp.eq.s32.totalorder %s28, 4
      %p51 = por %p49, %p50
      %p53 = scmp.ne.s32.totalorder %s36, %s52
      %p54 = scmp.eq.s32.totalorder %s28, 0
      %p55 = por %p53, %p54
      %s57 = sadd.s32 %s56, 1
      %p60 = scmp.eq.s32.totalorder %s22, 4
      %p61 = scmp.ne.s32.totalorder %s56, %s58
      %p62 = scmp.eq.s32.totalorder %s22, 0
      %p63 = por %p61, %p62
      %p64 = scmp.ne.s32.totalorder %s56, %s58
      %p65 = scmp.eq.s32.totalorder %s27, 4
      %p66 = por %p64, %p65
      %p67 = scmp.ne.s32.totalorder %s58, %s59
      %p68 = scmp.eq.s32.totalorder %s27, 0
      %p69 = por %p67, %p68
      %p70 = scmp.ne.s32.totalorder %s58, %s59
      %p71 = scmp.eq.s32.totalorder %s28, 4
      %p72 = por %p70, %p71
      %p74 = scmp.ne.s32.totalorder %s59, %s73
      %p75 = scmp.eq.s32.totalorder %s28, 0
      %p76 = por %p74, %p75
      %s78 = sadd.s32 %s77, 1
      %p81 = scmp.eq.s32.totalorder %s22, 4
      %p82 = scmp.ne.s32.totalorder %s77, %s79
      %p83 = scmp.eq.s32.totalorder %s22, 0
      %p84 = por %p82, %p83
      %p85 = scmp.ne.s32.totalorder %s77, %s79
      %p86 = scmp.eq.s32.totalorder %s27, 4
      %p87 = por %p85, %p86
      %p88 = scmp.ne.s32.totalorder %s79, %s80
      %p89 = scmp.eq.s32.totalorder %s27, 0
      %p90 = por %p88, %p89
      %p91 = scmp.ne.s32.totalorder %s79, %s80
      %p92 = scmp.eq.s32.totalorder %s28, 4
      %p93 = por %p91, %p92
      %p95 = scmp.ne.s32.totalorder %s80, %s94
      %p96 = scmp.eq.s32.totalorder %s28, 0
      %p97 = por %p95, %p96
      %s99 = sadd.s32 %s98, 1
      %p102 = scmp.eq.s32.totalorder %s22, 4
      %p103 = scmp.ne.s32.totalorder %s98, %s100
      %p104 = scmp.eq.s32.totalorder %s22, 0
      %p105 = por %p103, %p104
      %p106 = scmp.ne.s32.totalorder %s98, %s100
      %p107 = scmp.eq.s32.totalorder %s27, 4
      %p108 = por %p106, %p107
      %p109 = scmp.ne.s32.totalorder %s100, %s101
      %p110 = scmp.eq.s32.totalorder %s27, 0
      %p111 = por %p109, %p110
      %p112 = scmp.ne.s32.totalorder %s100, %s101
      %p113 = scmp.eq.s32.totalorder %s28, 4
      %p114 = por %p112, %p113
      %p116 = scmp.ne.s32.totalorder %s101, %s115
      %p117 = scmp.eq.s32.totalorder %s28, 0
      %p118 = por %p116, %p117
      %s120 = sadd.s32 %s119, 1
      %p123 = scmp.eq.s32.totalorder %s22, 4
      %p124 = scmp.ne.s32.totalorder %s119, %s121
      %p125 = scmp.eq.s32.totalorder %s22, 0
      %p126 = por %p124, %p125
      %p127 = scmp.ne.s32.totalorder %s119, %s121
      %p128 = scmp.eq.s32.totalorder %s27, 4
      %p129 = por %p127, %p128
      %p130 = scmp.ne.s32.totalorder %s121, %s122
      %p131 = scmp.eq.s32.totalorder %s27, 0
      %p132 = por %p130, %p131
      %p133 = scmp.ne.s32.totalorder %s121, %s122
      %p134 = scmp.eq.s32.totalorder %s28, 4
      %p135 = por %p133, %p134
      %p137 = scmp.ne.s32.totalorder %s122, %s136
      %p138 = scmp.eq.s32.totalorder %s28, 0
      %p139 = por %p137, %p138
      %s141 = sadd.s32 %s140, 1
      %p144 = scmp.eq.s32.totalorder %s22, 4
      %p145 = scmp.ne.s32.totalorder %s140, %s142
      %p146 = scmp.eq.s32.totalorder %s22, 0
      %p147 = por %p145, %p146
      %p148 = scmp.ne.s32.totalorder %s140, %s142
      %p149 = scmp.eq.s32.totalorder %s27, 4
      %p150 = por %p148, %p149
      %p151 = scmp.ne.s32.totalorder %s142, %s143
      %p152 = scmp.eq.s32.totalorder %s27, 0
      %p153 = por %p151, %p152
      %p154 = scmp.ne.s32.totalorder %s142, %s143
      %p155 = scmp.eq.s32.totalorder %s28, 4
      %p156 = por %p154, %p155
      %p158 = scmp.ne.s32.totalorder %s143, %s157
      %p159 = scmp.eq.s32.totalorder %s28, 0
      %p160 = por %p158, %p159
      %s162 = sadd.s32 %s161, 1
      %p165 = scmp.eq.s32.totalorder %s22, 4
      %p166 = scmp.ne.s32.totalorder %s161, %s163
      %p167 = scmp.eq.s32.totalorder %s22, 0
      %p168 = por %p166, %p167
      %p169 = scmp.ne.s32.totalorder %s161, %s163
      %p170 = scmp.eq.s32.totalorder %s27, 4
      %p171 = por %p169, %p170
      %p172 = scmp.ne.s32.totalorder %s163, %s164
      %p173 = scmp.eq.s32.totalorder %s27, 0
      %p174 = por %p172, %p173
      %p175 = scmp.ne.s32.totalorder %s163, %s164
      %p176 = scmp.eq.s32.totalorder %s28, 4
      %p177 = por %p175, %p176
      %p179 = scmp.ne.s32.totalorder %s164, %s178
      %p180 = scmp.eq.s32.totalorder %s28, 0
      %p181 = por %p179, %p180
      %s183 = sadd.s32 %s182, 1
      %p186 = scmp.eq.s32.totalorder %s22, 4
      %p187 = scmp.ne.s32.totalorder %s182, %s184
      %p188 = scmp.eq.s32.totalorder %s22, 0
      %p189 = por %p187, %p188
      %p190 = scmp.ne.s32.totalorder %s182, %s184
      %p191 = scmp.eq.s32.totalorder %s27, 4
      %p192 = por %p190, %p191
      %p193 = scmp.ne.s32.totalorder %s184, %s185
      %p194 = scmp.eq.s32.totalorder %s27, 0
      %p195 = por %p193, %p194
      %p196 = scmp.ne.s32.totalorder %s184, %s185
      %p197 = scmp.eq.s32.totalorder %s28, 4
      %p198 = por %p196, %p197
      %p200 = scmp.ne.s32.totalorder %s185, %s199
      %p201 = scmp.eq.s32.totalorder %s28, 0
      %p202 = por %p200, %p201
      %s204 = sadd.s32 %s203, 1
      %p207 = scmp.eq.s32.totalorder %s22, 4
      %p208 = scmp.ne.s32.totalorder %s203, %s205
      %p209 = scmp.eq.s32.totalorder %s22, 0
      %p210 = por %p208, %p209
      %p211 = scmp.ne.s32.totalorder %s203, %s205
      %p212 = scmp.eq.s32.totalorder %s27, 4
      %p213 = por %p211, %p212
      %p214 = scmp.ne.s32.totalorder %s205, %s206
      %p215 = scmp.eq.s32.totalorder %s27, 0
      %p216 = por %p214, %p215
      %p217 = scmp.ne.s32.totalorder %s205, %s206
      %p218 = scmp.eq.s32.totalorder %s28, 4
      %p219 = por %p217, %p218
      %p221 = scmp.ne.s32.totalorder %s206, %s220
      %p222 = scmp.eq.s32.totalorder %s28, 0
      %p223 = por %p221, %p222
      %s224 = ssub.s32 %s22, %s29
      %p225 = scmp.eq.s32.totalorder %s224, 0
      %s227 = sadd.s32 %s226, 1
      %s228 = scalar_select %p225, %s226, %s227
      %p231 = pneg %p225
      %p232 = scmp.eq.s32.totalorder %s22, 4
      %p233 = por %p231, %p232
      %p234 = scmp.ne.s32.totalorder %s226, %s229
      %p235 = scmp.eq.s32.totalorder %s22, 0
      %p236 = por %p234, %p235
      %p237 = scmp.ne.s32.totalorder %s226, %s229
      %p238 = scmp.eq.s32.totalorder %s27, 4
      %p239 = por %p237, %p238
      %p240 = scmp.ne.s32.totalorder %s229, %s230
      %p241 = scmp.eq.s32.totalorder %s27, 0
      %p242 = por %p240, %p241
      %p243 = scmp.ne.s32.totalorder %s229, %s230
      %p244 = scmp.eq.s32.totalorder %s28, 4
      %p245 = por %p243, %p244
      %p247 = scmp.ne.s32.totalorder %s230, %s246
      %p248 = scmp.eq.s32.totalorder %s28, 0
      %p249 = por %p247, %p248
      %p250 = scmp.le.s32.totalorder 1, %s22
      %p251 = scmp.lt.s32.totalorder %s22, 6
      %p252 = pnand %p250, %p251
      %p253 = pneg %p252
      // Predicated region
      $region9: #{_apply_grouped.1} parent=5 // pred_check
        _
      $region10: #{_apply_grouped.1} parent=5 // pred_check_branch
        %255 = sbr.rel (%p252) target = $region12
      $region11: #{_apply_grouped.1} parent=5 // pred_region
        %s256 = ssub.s32 %s22, 1
        // Predicated region
        $region13: #{_apply_grouped.1} parent=11 // pred_check
          %p257 = pneg %p69
        $region14: #{_apply_grouped.1} parent=11 // pred_check_branch
          %259 = sbr.rel (%p257) target = $region16
        $region15: #{_apply_grouped.1} parent=11 // pred_region
          _
        $region16: #{_apply_grouped.1} parent=11 // pred_fallthru
          _
        // Predicated region
        $region17: #{_apply_grouped.1} parent=11 // pred_check
          %p260 = pneg %p90
        $region18: #{_apply_grouped.1} parent=11 // pred_check_branch
          %262 = sbr.rel (%p260) target = $region20
        $region19: #{_apply_grouped.1} parent=11 // pred_region
          _
        $region20: #{_apply_grouped.1} parent=11 // pred_fallthru
          _
        // Predicated region
        $region21: #{_apply_grouped.1} parent=11 // pred_check
          %p263 = pneg %p111
        $region22: #{_apply_grouped.1} parent=11 // pred_check_branch
          %265 = sbr.rel (%p263) target = $region24
        $region23: #{_apply_grouped.1} parent=11 // pred_region
          _
        $region24: #{_apply_grouped.1} parent=11 // pred_fallthru
          _
        // Predicated region
        $region25: #{_apply_grouped.1} parent=11 // pred_check
          %p266 = pneg %p132
        $region26: #{_apply_grouped.1} parent=11 // pred_check_branch
          %268 = sbr.rel (%p266) target = $region28
        $region27: #{_apply_grouped.1} parent=11 // pred_region
          _
        $region28: #{_apply_grouped.1} parent=11 // pred_fallthru
          _
        // Predicated region
        $region29: #{_apply_grouped.1} parent=11 // pred_check
          %p269 = pneg %p153
        $region30: #{_apply_grouped.1} parent=11 // pred_check_branch
          %271 = sbr.rel (%p269) target = $region32
        $region31: #{_apply_grouped.1} parent=11 // pred_region
          _
        $region32: #{_apply_grouped.1} parent=11 // pred_fallthru
          _
        // Predicated region
        $region33: #{_apply_grouped.1} parent=11 // pred_check
          %p272 = pneg %p174
        $region34: #{_apply_grouped.1} parent=11 // pred_check_branch
          %274 = sbr.rel (%p272) target = $region36
        $region35: #{_apply_grouped.1} parent=11 // pred_region
          _
        $region36: #{_apply_grouped.1} parent=11 // pred_fallthru
          _
        // Predicated region
        $region37: #{_apply_grouped.1} parent=11 // pred_check
          %p275 = pneg %p195
        $region38: #{_apply_grouped.1} parent=11 // pred_check_branch
          %277 = sbr.rel (%p275) target = $region40
        $region39: #{_apply_grouped.1} parent=11 // pred_region
          _
        $region40: #{_apply_grouped.1} parent=11 // pred_fallthru
          _
        // Predicated region
        $region41: #{_apply_grouped.1} parent=11 // pred_check
          %p278 = pneg %p216
        $region42: #{_apply_grouped.1} parent=11 // pred_check_branch
          %280 = sbr.rel (%p278) target = $region44
        $region43: #{_apply_grouped.1} parent=11 // pred_region
          _
        $region44: #{_apply_grouped.1} parent=11 // pred_fallthru
          _
      $region12: #{_apply_grouped.1} parent=5 // pred_fallthru
        _
      %p281 = scmp.lt.s32.totalorder %s22, 5
      // Predicated region
      $region45: #{_apply_grouped.1} parent=5 // pred_check
        %p282 = pneg %p281
      $region46: #{_apply_grouped.1} parent=5 // pred_check_branch
        %284 = sbr.rel (%p282) target = $region48
      $region47: #{_apply_grouped.1} parent=5 // pred_region
        // Predicated region
        $region49: #{_apply_grouped.1} parent=47 // pred_check
          %p285 = pneg %p42
        $region50: #{_apply_grouped.1} parent=47 // pred_check_branch
          %287 = sbr.rel (%p285) target = $region52
        $region51: #{_apply_grouped.1} parent=47 // pred_region
          %s288 = sand.u32 %s32, 1
          %s289 = sand.u32 %s32, 1
          %s290 = smul.addr %s289, 32
          %s291 = scalar_lea.vmem [#allocation4], %s290
          %s292 = smul.u32 2, %s22
          %s293 = smul.addr %s292, 4
          %s294 = scalar_lea.vmem %s1, %s293
          // Predicated region
          $region53: #{_apply_grouped.1} parent=51 // pred_check
            _
          $region54: #{_apply_grouped.1} parent=51 // pred_check_branch
            %296 = sbr.rel (0) target = $region56
          $region55: #{_apply_grouped.1} parent=51 // pred_region
            // Predicated region
            $region57: #{_apply_grouped.1} parent=55 // pred_check
              _
            $region58: #{_apply_grouped.1} parent=55 // pred_check_branch
              %298 = sbr.rel (0) target = $region60
            $region59: #{_apply_grouped.1} parent=55 // pred_region
              // Predicated region
              $region72: #{_apply_grouped.1} parent=59 // pred_check
                _
              $region73: #{_apply_grouped.1} parent=59 // pred_check_branch
                %319 = sbr.rel (0) target = $region75
              $region74: #{_apply_grouped.1} parent=59 // pred_region
                loop: start=0, step=1, limit=1
                $region76: #{_apply_grouped.1} parent=74 // loop_pre_header
                  _
                $region77: #{_apply_grouped.1} parent=74 // loop_header
                  %s321 = sphi 0, %s325
                  %p322 = scmp.ge.s32.totalorder %s321, 1
                  %s326 = sphi %s294, %s294
                  %s327 = sphi %s291, %s291
                $region78: #{_apply_grouped.1} parent=74 // loop_header_branch
                  %324 = sbr.rel (%p322) target = $region82
                $region79: #{_apply_grouped.1} parent=74 // loop_body
                  %v328 = vld [vmem:[%s326] sm:$0xff]
                  %329 = vst [vmem:[%s327] sm:$0xff] %v328
                  %v330 = vld [vmem:[%s326 + $0x28] sm:$0xff]
                  %331 = vst [vmem:[%s327 + $0x8] sm:$0xff] %v330
                  %v332 = vld [vmem:[%s326 + $0x50] sm:$0xff]
                  %333 = vst [vmem:[%s327 + $0x10] sm:$0xff] %v332
                  %v334 = vld [vmem:[%s326 + $0x78] sm:$0xff]
                  %335 = vst [vmem:[%s327 + $0x18] sm:$0xff] %v334
                $region80: #{_apply_grouped.1} parent=74 // loop_footer
                  %s325 = sadd.s32 1, %s321
                $region81: #{_apply_grouped.1} parent=74 // loop_footer_branch
                  %320 = sbr.rel target = $region77
                $region82: #{_apply_grouped.1} parent=74 // loop_exit
                  _
              $region75: #{_apply_grouped.1} parent=59 // pred_fallthru
                _
              // Predicated region
              $region83: #{_apply_grouped.1} parent=59 // pred_check
                _
              $region84: #{_apply_grouped.1} parent=59 // pred_check_branch
                %337 = sbr.rel target = $region86
              $region85: #{_apply_grouped.1} parent=59 // pred_region
                _
              $region86: #{_apply_grouped.1} parent=59 // pred_fallthru
                _
            $region60: #{_apply_grouped.1} parent=55 // pred_fallthru
              _
            // Predicated region
            $region61: #{_apply_grouped.1} parent=55 // pred_check
              _
            $region62: #{_apply_grouped.1} parent=55 // pred_check_branch
              %300 = sbr.rel target = $region64
            $region63: #{_apply_grouped.1} parent=55 // pred_region
              loop: start=0, step=1, limit=1
              $region65: #{_apply_grouped.1} parent=63 // loop_pre_header
                _
              $region66: #{_apply_grouped.1} parent=63 // loop_header
                %s303 = sphi 0, %s307
                %p304 = scmp.ge.s32.totalorder %s303, 1
                %s308 = sphi %s294, %s294
                %s309 = sphi %s291, %s291
              $region67: #{_apply_grouped.1} parent=63 // loop_header_branch
                %306 = sbr.rel (%p304) target = $region71
              $region68: #{_apply_grouped.1} parent=63 // loop_body
                %v310 = vld [vmem:[%s308] sm:$0xff]
                %311 = vst [vmem:[%s309] sm:$0xff] %v310
                %v312 = vld [vmem:[%s308 + $0x28] sm:$0xff]
                %313 = vst [vmem:[%s309 + $0x8] sm:$0xff] %v312
                %v314 = vld [vmem:[%s308 + $0x50] sm:$0xff]
                %315 = vst [vmem:[%s309 + $0x10] sm:$0xff] %v314
                %v316 = vld [vmem:[%s308 + $0x78] sm:$0xff]
                %317 = vst [vmem:[%s309 + $0x18] sm:$0xff] %v316
              $region69: #{_apply_grouped.1} parent=63 // loop_footer
                %s307 = sadd.s32 1, %s303
              $region70: #{_apply_grouped.1} parent=63 // loop_footer_branch
                %302 = sbr.rel target = $region66
              $region71: #{_apply_grouped.1} parent=63 // loop_exit
                _
            $region64: #{_apply_grouped.1} parent=55 // pred_fallthru
              _
          $region56: #{_apply_grouped.1} parent=51 // pred_fallthru
            _
          %338 = vnop
        $region52: #{_apply_grouped.1} parent=47 // pred_fallthru
          _
      $region48: #{_apply_grouped.1} parent=5 // pred_fallthru
        _
      %p339 = scmp.le.s32.totalorder 1, %s22
      %p340 = scmp.lt.s32.totalorder %s22, 6
      %p341 = pnand %p339, %p340
      %p342 = pneg %p341
      // Predicated region
      $region87: #{_apply_grouped.1} parent=5 // pred_check
        _
      $region88: #{_apply_grouped.1} parent=5 // pred_check_branch
        %344 = sbr.rel (%p341) target = $region90
      $region89: #{_apply_grouped.1} parent=5 // pred_region
        %s345 = ssub.s32 %s22, 1
        %s346 = sand.u32 %s35, 1
        %s347 = sand.u32 %s35, 1
        %s348 = smul.addr %s347, 32
        %s349 = scalar_lea.vmem [#allocation4], %s348
        // Predicated region
        $region91: #{_apply_grouped.1} parent=89 // pred_check
          %p350 = pneg %p48
        $region92: #{_apply_grouped.1} parent=89 // pred_check_branch
          %352 = sbr.rel (%p350) target = $region94
        $region93: #{_apply_grouped.1} parent=89 // pred_region
          _
        $region94: #{_apply_grouped.1} parent=89 // pred_fallthru
          _
        %s353 = sand.u32 %s35, 1
        %s354 = sand.u32 %s35, 1
        %s355 = smul.addr %s354, 32
        %s356 = scalar_lea.vmem [#allocation4], %s355
        %p357 = pneg %p48
        %p358 = pneg %p45
        %p359 = pneg %p69
        %p360 = pneg %p66
        %p361 = pneg %p90
        %p362 = pneg %p87
        %p363 = pneg %p111
        %p364 = pneg %p108
        %p365 = pneg %p132
        %p366 = pneg %p129
        %p367 = pneg %p153
        %p368 = pneg %p150
        %p369 = pneg %p174
        %p370 = pneg %p171
        %p371 = pneg %p195
        %p372 = pneg %p192
        %p373 = pneg %p216
        %p374 = pneg %p213
        %p375 = pneg %p242
        %p376 = pneg %p239
        %s377 = smul.u32 2, %s27
        %p378 = scmp.lt.s32.totalorder %s377, 9
        %s379 = scalar_select %p378, %s377, 9
        %s380 = scalar_lea.vmem %s10, %s379
        %s381 = smul.u32 2, %s27
        %s382 = smul.u32 2, %s27
        %p383 = scmp.lt.s32.totalorder %s382, 9
        %s384 = scalar_select %p383, %s382, 9
        %s385 = scalar_lea.vmem %s10, %s384
        %s386 = smul.u32 2, %s27
        %s388 = sld [smem:[#allocation3 + %s27]]
        %v389 = vld [vmem:[%s349] sm:$0xff]
        %v390 = vld [vmem:[%s349 + $0x8] sm:$0xff]
        %v391 = vld [vmem:[%s349 + $0x10] sm:$0xff]
        %v392 = vld [vmem:[%s349 + $0x18] sm:$0xff]
        %s393 = smul.u32 %s388, 8
        %s394 = smul.addr %s393, 4
        %s395 = scalar_lea.vmem %s2, %s394
        %v396 = vld [vmem:[%s395] sm:$0xf]
        %v397 = vld [vmem:[%s395 + $0x4] sm:$0xf]
        %v398 = vld [vmem:[%s395 + $0x8] sm:$0xf]
        %v399 = vld [vmem:[%s395 + $0xc] sm:$0xf]
        %v400 = vld [vmem:[%s395 + $0x10] sm:$0xf]
        %v401 = vld [vmem:[%s395 + $0x14] sm:$0xf]
        %v402 = vld [vmem:[%s395 + $0x18] sm:$0xf]
        %v403 = vld [vmem:[%s395 + $0x1c] sm:$0xf]
        %s404 = smul.u32 %s388, 64
        %s405 = scalar_lea.vmem %s3, %s404
        %v406 = vld [vmem:[%s405] sm:$0xff]
        %v407 = vld [vmem:[%s405 + $0x8] sm:$0xff]
        %v408 = vld [vmem:[%s405 + $0x10] sm:$0xff]
        %v409 = vld [vmem:[%s405 + $0x18] sm:$0xff]
        %v410 = vld [vmem:[%s405 + $0x20] sm:$0xff]
        %v411 = vld [vmem:[%s405 + $0x28] sm:$0xff]
        %v412 = vld [vmem:[%s405 + $0x30] sm:$0xff]
        %v413 = vld [vmem:[%s405 + $0x38] sm:$0xff]
        %415 = vset.pattern.permute.xlu0 0
        %416 = vperm.xlu0 %415, %v406
        %v417 = vpop.permute.xlu0 %416
        %420 = vset.pattern.permute.xlu0 0
        %421 = vperm.xlu0 %420, %v407
        %v422 = vpop.permute.xlu0 %421
        %425 = vset.pattern.permute.xlu0 0
        %426 = vperm.xlu0 %425, %v408
        %v427 = vpop.permute.xlu0 %426
        %430 = vset.pattern.permute.xlu0 0
        %431 = vperm.xlu0 %430, %v409
        %v432 = vpop.permute.xlu0 %431
        %435 = vset.pattern.permute.xlu0 0
        %436 = vperm.xlu0 %435, %v410
        %v437 = vpop.permute.xlu0 %436
        %440 = vset.pattern.permute.xlu0 0
        %441 = vperm.xlu0 %440, %v411
        %v442 = vpop.permute.xlu0 %441
        %445 = vset.pattern.permute.xlu0 0
        %446 = vperm.xlu0 %445, %v412
        %v447 = vpop.permute.xlu0 %446
        %450 = vset.pattern.permute.xlu0 0
        %451 = vperm.xlu0 %450, %v413
        %v452 = vpop.permute.xlu0 %451
        %v462 = vunpack.c.l.b16 %v396
        %v463 = vunpack.c.l.b16 %v397
        %v464 = vunpack.c.l.b16 %v398
        %v465 = vunpack.c.l.b16 %v399
        %v466 = vunpack.c.l.b16 %v400
        %v467 = vunpack.c.l.b16 %v401
        %v468 = vunpack.c.l.b16 %v402
        %v469 = vunpack.c.l.b16 %v403
        %v470 = vpack.c.b16 %v463, %v462
        %v471 = vpack.c.b16 %v465, %v464
        %v472 = vpack.c.b16 %v467, %v466
        %v473 = vpack.c.b16 %v469, %v468
        %v478 = vunpack.c.l.b16 %v389
        %v479 = vunpack.c.h.b16 %v389
        %v480 = vunpack.c.l.b16 %v390
        %v481 = vunpack.c.h.b16 %v390
        %v482 = vunpack.c.l.b16 %v391
        %v483 = vunpack.c.h.b16 %v391
        %v484 = vunpack.c.l.b16 %v392
        %v485 = vunpack.c.h.b16 %v392
        %v486 = vpack.c.b16 %v480, %v478
        %v487 = vpack.c.b16 %v481, %v479
        %v488 = vpack.c.b16 %v484, %v482
        %v489 = vpack.c.b16 %v485, %v483
        %vm494 = vcmask 261120
        %v496 = vsel %vm494, %v470, 0
        %v499 = vsel %vm494, %v471, 0
        %v502 = vsel %vm494, %v472, 0
        %v505 = vsel %vm494, %v473, 0
        %507 = vmatprep.subr.bf16.mxu0 %v487
        %508 = vmatpush1.bf16.msra.mxu0 %v486
        %509 = vmatprep.subr.bf16.mxu0 %v489
        %510 = vmatpush1.bf16.msra.mxu0 %v488
        %511 = vmatprep.subr.bf16.mxu0 0
        %512 = vmatpush1.bf16.msra.mxu0 0
        %513 = vmatprep.subr.bf16.mxu0 0
        %514 = vmatpush1.bf16.msra.mxu0 0
        %515 = vmatprep.subr.bf16.mxu0 0
        %516 = vmatpush1.bf16.msra.mxu0 0
        %517 = vmatprep.subr.bf16.mxu0 0
        %518 = vmatpush1.bf16.msra.mxu0 0
        %519 = vmatprep.subr.bf16.mxu0 0
        %520 = vmatpush1.bf16.msra.mxu0 0
        %521 = vmatprep.subr.bf16.mxu0 0
        %522 = vmatpush1.bf16.msra.mxu0 0
        %523 = vmatprep.subr.bf16.mxu0 0
        %524 = vmatpush1.bf16.msra.mxu0 0
        %525 = vmatprep.subr.bf16.mxu0 0
        %526 = vmatpush1.bf16.msra.mxu0 0
        %527 = vmatprep.subr.bf16.mxu0 0
        %528 = vmatpush1.bf16.msra.mxu0 0
        %529 = vmatprep.subr.bf16.mxu0 0
        %530 = vmatpush1.bf16.msra.mxu0 0
        %531 = vmatprep.subr.bf16.mxu0 0
        %532 = vmatpush1.bf16.msra.mxu0 0
        %533 = vmatprep.subr.bf16.mxu0 0
        %534 = vmatpush1.bf16.msra.mxu0 0
        %535 = vmatprep.subr.bf16.mxu0 0
        %536 = vmatpush1.bf16.msra.mxu0 0
        %537 = vmatprep.subr.bf16.mxu0 0
        %538 = vmatpush1.bf16.msra.mxu0 0
        %539 = vmatprep.mubr.bf16.mxu0 0
        %540 = vmatmul.mubr.bf16.gmra.mrb[0].mxu0 %v496
        %v541 = vpop.f32.mrb[0].mxu0
        %v542 = vadd.f32 %v417, %v541
        %v543 = vpop.f32.mrb[0].mxu0
        %v544 = vadd.f32 %v417, %v543
        %v545 = vpop.f32.mrb[0].mxu0
        %v546 = vadd.f32 %v422, %v545
        %v547 = vpop.f32.mrb[0].mxu0
        %v548 = vadd.f32 %v422, %v547
        %549 = vmatprep.mubr.bf16.mxu0 0
        %550 = vmatmul.mubr.bf16.gmra.mrb[0].mxu0 %v499
        %v551 = vpop.f32.mrb[0].mxu0
        %v552 = vadd.f32 %v427, %v551
        %v553 = vpop.f32.mrb[0].mxu0
        %v554 = vadd.f32 %v427, %v553
        %v555 = vpop.f32.mrb[0].mxu0
        %v556 = vadd.f32 %v432, %v555
        %v557 = vpop.f32.mrb[0].mxu0
        %v558 = vadd.f32 %v432, %v557
        %559 = vmatprep.mubr.bf16.mxu0 0
        %560 = vmatmul.mubr.bf16.gmra.mrb[0].mxu0 %v502
        %v561 = vpop.f32.mrb[0].mxu0
        %v562 = vadd.f32 %v437, %v561
        %v563 = vpop.f32.mrb[0].mxu0
        %v564 = vadd.f32 %v437, %v563
        %v565 = vpop.f32.mrb[0].mxu0
        %v566 = vadd.f32 %v442, %v565
        %v567 = vpop.f32.mrb[0].mxu0
        %v568 = vadd.f32 %v442, %v567
        %569 = vmatprep.mubr.bf16.mxu0 0
        %570 = vmatmul.mubr.bf16.gmra.mrb[0].mxu0 %v505
        %v571 = vpop.f32.mrb[0].mxu0
        %v572 = vadd.f32 %v447, %v571
        %v573 = vpop.f32.mrb[0].mxu0
        %v574 = vadd.f32 %v447, %v573
        %v575 = vpop.f32.mrb[0].mxu0
        %v576 = vadd.f32 %v452, %v575
        %v577 = vpop.f32.mrb[0].mxu0
        %v578 = vadd.f32 %v452, %v577
        %579 = vdwg.mxu0
        %v580 = vmax.f32 %v542, 0.0
        %v581 = vmax.f32 %v544, 0.0
        %v582 = vmax.f32 %v546, 0.0
        %v583 = vmax.f32 %v548, 0.0
        %v584 = vmax.f32 %v552, 0.0
        %v585 = vmax.f32 %v554, 0.0
        %v586 = vmax.f32 %v556, 0.0
        %v587 = vmax.f32 %v558, 0.0
        %v588 = vmax.f32 %v562, 0.0
        %v589 = vmax.f32 %v564, 0.0
        %v590 = vmax.f32 %v566, 0.0
        %v591 = vmax.f32 %v568, 0.0
        %v592 = vmax.f32 %v572, 0.0
        %v593 = vmax.f32 %v574, 0.0
        %v594 = vmax.f32 %v576, 0.0
        %v595 = vmax.f32 %v578, 0.0
        %v596 = vpack.c.bf16 %v582, %v580
        %v597 = vpack.c.bf16 %v583, %v581
        %v598 = vpack.c.bf16 %v586, %v584
        %v599 = vpack.c.bf16 %v587, %v585
        %v600 = vpack.c.bf16 %v590, %v588
        %v601 = vpack.c.bf16 %v591, %v589
        %v602 = vpack.c.bf16 %v594, %v592
        %v603 = vpack.c.bf16 %v595, %v593
        %s604 = smul.addr %s393, 4
        %s605 = scalar_lea.vmem %s4, %s604
        %v606 = vld [vmem:[%s605] sm:$0xf]
        %v607 = vld [vmem:[%s605 + $0x4] sm:$0xf]
        %v608 = vld [vmem:[%s605 + $0x8] sm:$0xf]
        %v609 = vld [vmem:[%s605 + $0xc] sm:$0xf]
        %v610 = vld [vmem:[%s605 + $0x10] sm:$0xf]
        %v611 = vld [vmem:[%s605 + $0x14] sm:$0xf]
        %v612 = vld [vmem:[%s605 + $0x18] sm:$0xf]
        %v613 = vld [vmem:[%s605 + $0x1c] sm:$0xf]
        %s614 = scalar_lea.vmem %s5, %s404
        %v615 = vld [vmem:[%s614] sm:$0xff]
        %v616 = vld [vmem:[%s614 + $0x8] sm:$0xff]
        %v617 = vld [vmem:[%s614 + $0x10] sm:$0xff]
        %v618 = vld [vmem:[%s614 + $0x18] sm:$0xff]
        %v619 = vld [vmem:[%s614 + $0x20] sm:$0xff]
        %v620 = vld [vmem:[%s614 + $0x28] sm:$0xff]
        %v621 = vld [vmem:[%s614 + $0x30] sm:$0xff]
        %v622 = vld [vmem:[%s614 + $0x38] sm:$0xff]
        %624 = vset.pattern.permute.xlu0 0
        %625 = vperm.xlu0 %624, %v615
        %v626 = vpop.permute.xlu0 %625
        %629 = vset.pattern.permute.xlu0 0
        %630 = vperm.xlu0 %629, %v616
        %v631 = vpop.permute.xlu0 %630
        %634 = vset.pattern.permute.xlu0 0
        %635 = vperm.xlu0 %634, %v617
        %v636 = vpop.permute.xlu0 %635
        %639 = vset.pattern.permute.xlu0 0
        %640 = vperm.xlu0 %639, %v618
        %v641 = vpop.permute.xlu0 %640
        %644 = vset.pattern.permute.xlu0 0
        %645 = vperm.xlu0 %644, %v619
        %v646 = vpop.permute.xlu0 %645
        %649 = vset.pattern.permute.xlu0 0
        %650 = vperm.xlu0 %649, %v620
        %v651 = vpop.permute.xlu0 %650
        %654 = vset.pattern.permute.xlu0 0
        %655 = vperm.xlu0 %654, %v621
        %v656 = vpop.permute.xlu0 %655
        %659 = vset.pattern.permute.xlu0 0
        %660 = vperm.xlu0 %659, %v622
        %v661 = vpop.permute.xlu0 %660
        %v671 = vunpack.c.l.b16 %v606
        %v672 = vunpack.c.l.b16 %v607
        %v673 = vunpack.c.l.b16 %v608
        %v674 = vunpack.c.l.b16 %v609
        %v675 = vunpack.c.l.b16 %v610
        %v676 = vunpack.c.l.b16 %v611
        %v677 = vunpack.c.l.b16 %v612
        %v678 = vunpack.c.l.b16 %v613
        %v679 = vpack.c.b16 %v672, %v671
        %v680 = vpack.c.b16 %v674, %v673
        %v681 = vpack.c.b16 %v676, %v675
        %v682 = vpack.c.b16 %v678, %v677
        %vm683 = vcmask 523264
        %v685 = vsel %vm683, %v679, 0
        %v688 = vsel %vm683, %v680, 0
        %v691 = vsel %vm683, %v681, 0
        %v694 = vsel %vm683, %v682, 0
        %696 = vmatprep.subr.bf16.mxu0 %v597
        %697 = vmatpush1.bf16.msra.mxu0 %v596
        %698 = vmatprep.subr.bf16.mxu0 %v599
        %699 = vmatpush1.bf16.msra.mxu0 %v598
        %700 = vmatprep.subr.bf16.mxu0 %v601
        %701 = vmatpush1.bf16.msra.mxu0 %v600
        %702 = vmatprep.subr.bf16.mxu0 %v603
        %703 = vmatpush1.bf16.msra.mxu0 %v602
        %704 = vmatprep.subr.bf16.mxu0 0
        %705 = vmatpush1.bf16.msra.mxu0 0
        %706 = vmatprep.subr.bf16.mxu0 0
        %707 = vmatpush1.bf16.msra.mxu0 0
        %708 = vmatprep.subr.bf16.mxu0 0
        %709 = vmatpush1.bf16.msra.mxu0 0
        %710 = vmatprep.subr.bf16.mxu0 0
        %711 = vmatpush1.bf16.msra.mxu0 0
        %712 = vmatprep.subr.bf16.mxu0 0
        %713 = vmatpush1.bf16.msra.mxu0 0
        %714 = vmatprep.subr.bf16.mxu0 0
        %715 = vmatpush1.bf16.msra.mxu0 0
        %716 = vmatprep.subr.bf16.mxu0 0
        %717 = vmatpush1.bf16.msra.mxu0 0
        %718 = vmatprep.subr.bf16.mxu0 0
        %719 = vmatpush1.bf16.msra.mxu0 0
        %720 = vmatprep.subr.bf16.mxu0 0
        %721 = vmatpush1.bf16.msra.mxu0 0
        %722 = vmatprep.subr.bf16.mxu0 0
        %723 = vmatpush1.bf16.msra.mxu0 0
        %724 = vmatprep.subr.bf16.mxu0 0
        %725 = vmatpush1.bf16.msra.mxu0 0
        %726 = vmatprep.subr.bf16.mxu0 0
        %727 = vmatpush1.bf16.msra.mxu0 0
        %728 = vmatprep.mubr.bf16.mxu0 0
        %729 = vmatmul.mubr.bf16.gmra.mrb[0].mxu0 %v685
        %v730 = vpop.f32.mrb[0].mxu0
        %v731 = vadd.f32 %v626, %v730
        %v732 = vpop.f32.mrb[0].mxu0
        %v733 = vadd.f32 %v626, %v732
        %v734 = vpop.f32.mrb[0].mxu0
        %v735 = vadd.f32 %v631, %v734
        %v736 = vpop.f32.mrb[0].mxu0
        %v737 = vadd.f32 %v631, %v736
        %738 = vmatprep.mubr.bf16.mxu0 0
        %739 = vmatmul.mubr.bf16.gmra.mrb[0].mxu0 %v688
        %v740 = vpop.f32.mrb[0].mxu0
        %v741 = vadd.f32 %v636, %v740
        %v742 = vpop.f32.mrb[0].mxu0
        %v743 = vadd.f32 %v636, %v742
        %v744 = vpop.f32.mrb[0].mxu0
        %v745 = vadd.f32 %v641, %v744
        %v746 = vpop.f32.mrb[0].mxu0
        %v747 = vadd.f32 %v641, %v746
        %748 = vmatprep.mubr.bf16.mxu0 0
        %749 = vmatmul.mubr.bf16.gmra.mrb[0].mxu0 %v691
        %v750 = vpop.f32.mrb[0].mxu0
        %v751 = vadd.f32 %v646, %v750
        %v752 = vpop.f32.mrb[0].mxu0
        %v753 = vadd.f32 %v646, %v752
        %v754 = vpop.f32.mrb[0].mxu0
        %v755 = vadd.f32 %v651, %v754
        %v756 = vpop.f32.mrb[0].mxu0
        %v757 = vadd.f32 %v651, %v756
        %758 = vmatprep.mubr.bf16.mxu0 0
        %759 = vmatmul.mubr.bf16.gmra.mrb[0].mxu0 %v694
        %v760 = vpop.f32.mrb[0].mxu0
        %v761 = vadd.f32 %v656, %v760
        %v762 = vpop.f32.mrb[0].mxu0
        %v763 = vadd.f32 %v656, %v762
        %v764 = vpop.f32.mrb[0].mxu0
        %v765 = vadd.f32 %v661, %v764
        %v766 = vpop.f32.mrb[0].mxu0
        %v767 = vadd.f32 %v661, %v766
        %768 = vdwg.mxu0
        %v769 = vmax.f32 %v731, 0.0
        %v770 = vmax.f32 %v733, 0.0
        %v771 = vmax.f32 %v735, 0.0
        %v772 = vmax.f32 %v737, 0.0
        %v773 = vmax.f32 %v741, 0.0
        %v774 = vmax.f32 %v743, 0.0
        %v775 = vmax.f32 %v745, 0.0
        %v776 = vmax.f32 %v747, 0.0
        %v777 = vmax.f32 %v751, 0.0
        %v778 = vmax.f32 %v753, 0.0
        %v779 = vmax.f32 %v755, 0.0
        %v780 = vmax.f32 %v757, 0.0
        %v781 = vmax.f32 %v761, 0.0
        %v782 = vmax.f32 %v763, 0.0
        %v783 = vmax.f32 %v765, 0.0
        %v784 = vmax.f32 %v767, 0.0
        %v785 = vpack.c.bf16 %v771, %v769
        %v786 = vpack.c.bf16 %v772, %v770
        %v787 = vpack.c.bf16 %v775, %v773
        %v788 = vpack.c.bf16 %v776, %v774
        %v789 = vpack.c.bf16 %v779, %v777
        %v790 = vpack.c.bf16 %v780, %v778
        %v791 = vpack.c.bf16 %v783, %v781
        %v792 = vpack.c.bf16 %v784, %v782
        %s793 = smul.u32 %s388, 4
        %s794 = smul.addr %s793, 4
        %s795 = scalar_lea.vmem %s6, %s794
        %v796 = vld [vmem:[%s795] sm:$0xf]
        %v797 = vld [vmem:[%s795 + $0x4] sm:$0xf]
        %v798 = vld [vmem:[%s795 + $0x8] sm:$0xf]
        %v799 = vld [vmem:[%s795 + $0xc] sm:$0xf]
        %s800 = smul.u32 %s388, 32
        %s801 = scalar_lea.vmem %s7, %s800
        %v802 = vld [vmem:[%s801] sm:$0xff]
        %v803 = vld [vmem:[%s801 + $0x8] sm:$0xff]
        %v804 = vld [vmem:[%s801 + $0x10] sm:$0xff]
        %v805 = vld [vmem:[%s801 + $0x18] sm:$0xff]
        %807 = vset.pattern.permute.xlu0 0
        %808 = vperm.xlu0 %807, %v802
        %v809 = vpop.permute.xlu0 %808
        %812 = vset.pattern.permute.xlu0 0
        %813 = vperm.xlu0 %812, %v803
        %v814 = vpop.permute.xlu0 %813
        %817 = vset.pattern.permute.xlu0 0
        %818 = vperm.xlu0 %817, %v804
        %v819 = vpop.permute.xlu0 %818
        %822 = vset.pattern.permute.xlu0 0
        %823 = vperm.xlu0 %822, %v805
        %v824 = vpop.permute.xlu0 %823
        %v830 = vunpack.c.l.b16 %v796
        %v831 = vunpack.c.l.b16 %v797
        %v832 = vunpack.c.l.b16 %v798
        %v833 = vunpack.c.l.b16 %v799
        %v834 = vpack.c.b16 %v831, %v830
        %v835 = vpack.c.b16 %v833, %v832
        %v837 = vsel %vm683, %v834, 0
        %v840 = vsel %vm683, %v835, 0
        %842 = vmatprep.subr.bf16.mxu0 %v786
        %843 = vmatpush1.bf16.msra.mxu0 %v785
        %844 = vmatprep.subr.bf16.mxu0 %v788
        %845 = vmatpush1.bf16.msra.mxu0 %v787
        %846 = vmatprep.subr.bf16.mxu0 %v790
        %847 = vmatpush1.bf16.msra.mxu0 %v789
        %848 = vmatprep.subr.bf16.mxu0 %v792
        %849 = vmatpush1.bf16.msra.mxu0 %v791
        %850 = vmatprep.subr.bf16.mxu0 0
        %851 = vmatpush1.bf16.msra.mxu0 0
        %852 = vmatprep.subr.bf16.mxu0 0
        %853 = vmatpush1.bf16.msra.mxu0 0
        %854 = vmatprep.subr.bf16.mxu0 0
        %855 = vmatpush1.bf16.msra.mxu0 0
        %856 = vmatprep.subr.bf16.mxu0 0
        %857 = vmatpush1.bf16.msra.mxu0 0
        %858 = vmatprep.subr.bf16.mxu0 0
        %859 = vmatpush1.bf16.msra.mxu0 0
        %860 = vmatprep.subr.bf16.mxu0 0
        %861 = vmatpush1.bf16.msra.mxu0 0
        %862 = vmatprep.subr.bf16.mxu0 0
        %863 = vmatpush1.bf16.msra.mxu0 0
        %864 = vmatprep.subr.bf16.mxu0 0
        %865 = vmatpush1.bf16.msra.mxu0 0
        %866 = vmatprep.subr.bf16.mxu0 0
        %867 = vmatpush1.bf16.msra.mxu0 0
        %868 = vmatprep.subr.bf16.mxu0 0
        %869 = vmatpush1.bf16.msra.mxu0 0
        %870 = vmatprep.subr.bf16.mxu0 0
        %871 = vmatpush1.bf16.msra.mxu0 0
        %872 = vmatprep.subr.bf16.mxu0 0
        %873 = vmatpush1.bf16.msra.mxu0 0
        %874 = vmatprep.mubr.bf16.mxu0 0
        %875 = vmatmul.mubr.bf16.gmra.mrb[0].mxu0 %v837
        %v876 = vpop.f32.mrb[0].mxu0
        %v877 = vadd.f32 %v809, %v876
        %v878 = vpop.f32.mrb[0].mxu0
        %v879 = vadd.f32 %v809, %v878
        %v880 = vpop.f32.mrb[0].mxu0
        %v881 = vadd.f32 %v814, %v880
        %v882 = vpop.f32.mrb[0].mxu0
        %v883 = vadd.f32 %v814, %v882
        %884 = vmatprep.mubr.bf16.mxu0 0
        %885 = vmatmul.mubr.bf16.gmra.mrb[0].mxu0 %v840
        %v886 = vpop.f32.mrb[0].mxu0
        %v887 = vadd.f32 %v819, %v886
        %v888 = vpop.f32.mrb[0].mxu0
        %v889 = vadd.f32 %v819, %v888
        %v890 = vpop.f32.mrb[0].mxu0
        %v891 = vadd.f32 %v824, %v890
        %v892 = vpop.f32.mrb[0].mxu0
        %v893 = vadd.f32 %v824, %v892
        %894 = vdwg.mxu0
        %v895 = vmax.f32 %v877, 0.0
        %v896 = vmax.f32 %v879, 0.0
        %v897 = vmax.f32 %v881, 0.0
        %v898 = vmax.f32 %v883, 0.0
        %v899 = vmax.f32 %v887, 0.0
        %v900 = vmax.f32 %v889, 0.0
        %v901 = vmax.f32 %v891, 0.0
        %v902 = vmax.f32 %v893, 0.0
        %s903 = scalar_lea.vmem %s8, %s800
        %v904 = vld [vmem:[%s903] sm:$0xff]
        %v905 = vld [vmem:[%s903 + $0x8] sm:$0xff]
        %v906 = vld [vmem:[%s903 + $0x10] sm:$0xff]
        %v907 = vld [vmem:[%s903 + $0x18] sm:$0xff]
        %909 = vset.pattern.permute.xlu0 0
        %910 = vperm.xlu0 %909, %v904
        %v911 = vpop.permute.xlu0 %910
        %914 = vset.pattern.permute.xlu0 0
        %915 = vperm.xlu0 %914, %v905
        %v916 = vpop.permute.xlu0 %915
        %919 = vset.pattern.permute.xlu0 0
        %920 = vperm.xlu0 %919, %v906
        %v921 = vpop.permute.xlu0 %920
        %924 = vset.pattern.permute.xlu0 0
        %925 = vperm.xlu0 %924, %v907
        %v926 = vpop.permute.xlu0 %925
        %v928 = vmul.f32 %v895, %v911
        %v929 = vmul.f32 %v896, %v911
        %v930 = vmul.f32 %v897, %v916
        %v931 = vmul.f32 %v898, %v916
        %v932 = vmul.f32 %v899, %v921
        %v933 = vmul.f32 %v900, %v921
        %v934 = vmul.f32 %v901, %v926
        %v935 = vmul.f32 %v902, %v926
        %v936 = vadd.f32 %v928, %v930
        %v937 = vadd.f32 %v936, %v932
        %v938 = vadd.f32 %v937, %v934
        %v939 = vrot.slane %v938, 4
        %v940 = vadd.f32 %v938, %v939
        %v941 = vrot.slane %v940, 2
        %v942 = vadd.f32 %v940, %v941
        %v943 = vrot.slane %v942, 1
        %v944 = vadd.f32 %v942, %v943
        %v945 = vadd.f32 %v929, %v931
        %v946 = vadd.f32 %v945, %v933
        %v947 = vadd.f32 %v946, %v935
        %v948 = vrot.slane %v947, 4
        %v949 = vadd.f32 %v947, %v948
        %v950 = vrot.slane %v949, 2
        %v951 = vadd.f32 %v949, %v950
        %v952 = vrot.slane %v951, 1
        %v953 = vadd.f32 %v951, %v952
        %s954 = scalar_lea.vmem %s9, %s388
        %v955 = vld [vmem:[%s954] sm:$0x1]
        %957 = vset.pattern.permute.xlu0 0
        %958 = vperm.xlu0 %957, %v955
        %v959 = vpop.permute.xlu0 %958
        %v961 = vlaneseq
        %v962 = vshrl.u32 %v961, 7
        %v963 = vsub.s32 0, %v962
        %v964 = vrot.slane %v959, %v963
        %v965 = vadd.f32 %v944, %v964
        %v966 = vadd.f32 %v953, %v964
        %v969 = vcombine.low %v965, %v966
        %v971 = vunpack.c.l.s4 1966171168
        %v972 = vunpack.c.0.s8 %v971
        %v973 = vlaneseq
        %v974 = vshrl.u32 %v973, 7
        %v975 = vsub.s32 %v972, %v974
        %v976 = vrot.slane %v969, %v975
        %v978 = vunpack.c.l.s4 1966171168
        %v979 = vunpack.c.0.s8 %v978
        %v980 = vlaneseq
        %v981 = vshrl.u32 %v980, 7
        %v982 = vsub.s32 %v979, %v981
        %v983 = vrot.slane %v976, %v982
        %v985 = vlaneseq
        %vm986 = vcmp.ge.s32.totalorder %v985, 0
        %vm987 = vcmp.lt.s32.totalorder %v985, 256
        %vm988 = vmand %vm986, %vm987
        %989 = vst.msk [vmem:[%s385] sm:$0x3] %vm988, %v983
        %s990 = smul.u32 2, %s27
        %p991 = scmp.lt.s32.totalorder %s990, 9
        %s992 = scalar_select %p991, %s990, 9
        %s993 = scalar_lea.vmem %s10, %s992
        // Predicated region
        $region95: #{_apply_grouped.1} parent=89 // pred_check
          %p994 = pneg %p239
        $region96: #{_apply_grouped.1} parent=89 // pred_check_branch
          %996 = sbr.rel (%p994) target = $region98
        $region97: #{_apply_grouped.1} parent=89 // pred_region
          %s997 = smul.u32 2, %s27
        $region98: #{_apply_grouped.1} parent=89 // pred_fallthru
          _
      $region90: #{_apply_grouped.1} parent=5 // pred_fallthru
        _
      %p998 = scmp.le.s32.totalorder 2, %s22
      // Predicated region
      $region99: #{_apply_grouped.1} parent=5 // pred_check
        %p999 = pneg %p998
      $region100: #{_apply_grouped.1} parent=5 // pred_check_branch
        %1001 = sbr.rel (%p999) target = $region102
      $region101: #{_apply_grouped.1} parent=5 // pred_region
        %s1002 = ssub.s32 %s22, 2
        // Predicated region
        $region103: #{_apply_grouped.1} parent=101 // pred_check
          %p1003 = pneg %p245
        $region104: #{_apply_grouped.1} parent=101 // pred_check_branch
          %1005 = sbr.rel (%p1003) target = $region106
        $region105: #{_apply_grouped.1} parent=101 // pred_region
          %s1006 = smul.u32 2, %s28
          %p1007 = scmp.lt.s32.totalorder %s1006, 9
          %s1008 = scalar_select %p1007, %s1006, 9
          %s1009 = scalar_lea.vmem %s10, %s1008
        $region106: #{_apply_grouped.1} parent=101 // pred_fallthru
          _
      $region102: #{_apply_grouped.1} parent=5 // pred_fallthru
        _
    $region6: #{_apply_grouped.1} parent=1 // loop_footer
      %s26 = sadd.s32 1, %s22
    $region7: #{_apply_grouped.1} parent=1 // loop_footer_branch
      %21 = sbr.rel target = $region3
    $region8: #{_apply_grouped.1} parent=1 // loop_exit
      _

</llo_original>
